<compile_context>
chip_gen: v5e
topology: v5e:2x2
jax: 0.10.0
libtpu: 0.0.40
codegen_flags: <defaults>
</compile_context>

<pallas_src>
from functools import partial

import jax
import jax.numpy as jnp
from jax.experimental import pallas as pl
from jax.experimental.pallas import tpu as pltpu  # noqa: F401  (kept for TPU-specific tuning hooks)

_SUBLANES = 8
_LANES = 128
_TINY_BYTES = 512 * 1024          # <= 512 KiB: single full-extent block
_SMALL_BYTES = 8 * 1024 * 1024    # <= 8 MiB: at most 2 grid steps (per review)
_TILE_TARGET_BYTES = 4 * 1024 * 1024  # larger inputs: ~4 MiB tiles (far under VMEM limits)


def _relu_kernel(x_ref, o_ref):
    # Pure VPU elementwise max on the current VMEM tile.
    o_ref[...] = jnp.maximum(x_ref[...], 0)


def _choose_cols(total: int) -> int:
    """Widest lane-dense (multiple of 128) column count dividing the flat size."""
    for cols in (512, 384, 256, 128):
        if total % cols == 0:
            return cols
    return 0


@partial(jax.jit, donate_argnums=(0,))
def pallas_relu(x: jax.Array) -> jax.Array:
    """ReLU(x). The input buffer is donated (mirrors PyTorch ReLU(inplace=True))."""
    orig_shape = x.shape
    total = x.size
    itemsize = jnp.dtype(x.dtype).itemsize

    cols = _choose_cols(total)
    if total == 0 or cols == 0:
        # Flat size not a multiple of 128 (dead for the reference shape).
        # A plain XLA elementwise op is already a single fused HBM pass; padding
        # plus a Pallas launch would only add traffic and overhead.
        return jnp.maximum(x, 0)

    rows = total // cols
    x2d = x.reshape(rows, cols)  # contiguous -> free, lane-dense 2D view
    total_bytes = total * itemsize

    # Shallow grid: step count chosen by size / per-step overhead only.
    if total_bytes <= _TINY_BYTES or rows <= _SUBLANES:
        steps = 1
    elif total_bytes <= _SMALL_BYTES:
        steps = 2
    else:
        steps = pl.cdiv(total_bytes, _TILE_TARGET_BYTES)

    if steps == 1:
        block_rows = rows  # full-extent block: always legal
    else:
        block_rows = pl.cdiv(rows, steps)
        block_rows = ((block_rows + _SUBLANES - 1) // _SUBLANES) * _SUBLANES
    grid = (pl.cdiv(rows, block_rows),)

    out2d = pl.pallas_call(
        _relu_kernel,
        out_shape=jax.ShapeDtypeStruct((rows, cols), x.dtype),
        grid=grid,
        in_specs=[pl.BlockSpec((block_rows, cols), lambda i: (i, 0))],
        out_specs=pl.BlockSpec((block_rows, cols), lambda i: (i, 0)),
        # ReLU is naturally in-place: alias the output onto the (donated) input
        # so no second output buffer is allocated at the call boundary.
        input_output_aliases={0: 0},
        # Advisory cost so XLA can schedule/overlap this tiny, bandwidth-bound
        # call with neighboring ops instead of treating it as opaque.
        cost_estimate=pl.CostEstimate(
            flops=total, transcendentals=0, bytes_accessed=2 * total_bytes),
    )(x2d)

    return out2d.reshape(orig_shape)


class M:
    """JAX/Pallas equivalent of the PyTorch module M (a single ReLU(inplace=True))."""

    def __call__(self, x450):
        # In a full network this ReLU should be fused into the producing
        # conv/matmul epilogue; standalone, we pay one bandwidth-optimal pass.
        x451 = pallas_relu(x450)
        return x451


if __name__ == "__main__":
    key = jax.random.PRNGKey(0)
    # Reference shape from the PyTorch module: [1, 1664, 14, 14] (NCHW), ~1.27 MiB f32.
    x450 = jax.random.normal(key, (1, 1664, 14, 14), dtype=jnp.float32)

    # Compute the reference BEFORE calling the kernel (the input is donated).
    expected = jnp.maximum(x450, 0.0)
    in_shape, in_dtype = x450.shape, x450.dtype

    m = M()
    y = m(x450)  # donates x450 (module semantics: ReLU(inplace=True))
    jax.block_until_ready(y)

    assert y.shape == in_shape and y.dtype == in_dtype
    assert bool(jnp.all(y == expected))

    # Also exercise the non-lane-divisible fallback path once (pure XLA pass).
    x_odd = jax.random.normal(jax.random.PRNGKey(1), (2, 3, 5, 7), dtype=jnp.float32)
    expected_odd = jnp.maximum(x_odd, 0.0)
    y_odd = pallas_relu(x_odd)
    jax.block_until_ready(y_odd)
    assert bool(jnp.all(y_odd == expected_odd))

    print("KERNEL_OK")
</pallas_src>

<mosaic_0001>
module attributes {stable_mosaic.version = 11 : i64} {
  func.func @_relu_kernel(%arg0: i32, %arg1: memref<320x512xf32, #tpu.memory_space<vmem>>, %arg2: memref<320x512xf32, #tpu.memory_space<vmem>>) attributes {dimension_semantics = [#tpu.dimension_semantics<arbitrary>], iteration_bounds = array<i64: 2>, scalar_prefetch = 0 : i64, scratch_operands = 0 : i64, tpu.core_type = #tpu.core_type<tc>, window_params = [{transform_indices = @transform_0, window_bounds = array<i64: 320, 512>}, {transform_indices = @transform_1, window_bounds = array<i64: 320, 512>}]} {
    %c0 = arith.constant 0 : index
    %c0_0 = arith.constant 0 : index
    %0 = vector.load %arg1[%c0, %c0_0] : memref<320x512xf32, #tpu.memory_space<vmem>>, vector<320x512xf32>
    %cst = arith.constant 0.000000e+00 : f32
    %1 = vector.broadcast %cst : f32 to vector<320x512xf32>
    %2 = arith.maximumf %0, %1 : vector<320x512xf32>
    %c0_1 = arith.constant 0 : index
    %c0_2 = arith.constant 0 : index
    %3 = vector.load %arg2[%c0_1, %c0_2] : memref<320x512xf32, #tpu.memory_space<vmem>>, vector<320x512xf32>
    tpu.vector_store %arg2[%c0_1, %c0_2], %2 {strides = array<i32>} : memref<320x512xf32, #tpu.memory_space<vmem>>, vector<320x512xf32>,
    return
  }
  func.func @transform_0(%arg0: i32) -> (i32, i32) {
    %c0_i32 = arith.constant 0 : i32
    %c0_i32_0 = arith.constant 0 : i32
    return %arg0, %c0_i32 : i32, i32
  }
  func.func @transform_1(%arg0: i32) -> (i32, i32) {
    %c0_i32 = arith.constant 0 : i32
    %c0_i32_0 = arith.constant 0 : i32
    return %arg0, %c0_i32 : i32, i32
  }
}

</mosaic_0001>

<llo_original>
// kernel: pallas_relu.1
$region0: #{pallas_relu.1}
  #allocation0 [shape = 'u32[]', space=smem, size = 0x4, offset = 0x4, fixed_abs, tag = 'smem constant byte address 0x4 - core index']
  #allocation1 [shape = 'u32[72,128]{1,0:T(1,128)}', space=vmem, size = 0x9000, scoped, tag = 'internal scratch']
  %s0 = inlined_call_operand.vmem [shape: f32[637,512], index: 0, kind: input, shape index: {}, may-alias: {0,1}]
  %s1 = inlined_call_operand.vmem [shape: f32[637,512], index: 1, kind: output, shape index: {}, may-alias: {0,1}]
  %s2 = sld [smem:[#allocation0]]
  $region37: #{pallas_relu.1} parent=0
    _
  %s4 = ssub.s32 1, %s2
  %s5 = scalar_select 0, %s4, %s2
  loop: start=0, step=1, limit=4
  $region2: #{pallas_relu.1} parent=0 // loop_pre_header
    _
  $region3: #{pallas_relu.1} parent=0 // loop_header
    %s7 = sphi 0, %s11
    %p8 = scmp.ge.s32.totalorder %s7, 4
    %s17 = sphi 0, %s19
    %s20 = sphi 0, %s17
    %s21 = sphi 0, %s20
    %s37 = sphi 0, %s21
    %s43 = sphi 0, %s45
    %s46 = sphi 0, %s43
    %s47 = sphi 0, %s46
    %s63 = sphi 0, %s47
  $region4: #{pallas_relu.1} parent=0 // loop_header_branch
    %10 = sbr.rel (%p8) target = $region8
  $region5: #{pallas_relu.1} parent=0 // loop_body
    %s12 = ssub.s32 %s7, 1
    %s13 = ssub.s32 %s7, 2
    %s14 = sadd.s32 %s7, 1
    %s15 = ssub.s32 %s7, %s14
    %p16 = scmp.eq.s32.totalorder %s15, 0
    %s18 = sadd.s32 %s17, 1
    %s19 = scalar_select %p16, %s17, %s18
    %p22 = pneg %p16
    %p23 = scmp.eq.s32.totalorder %s7, 1
    %p24 = por %p22, %p23
    %p25 = scmp.ne.s32.totalorder %s17, %s20
    %p26 = scmp.eq.s32.totalorder %s7, 0
    %p27 = por %p25, %p26
    %p28 = scmp.ne.s32.totalorder %s17, %s20
    %p29 = scmp.eq.s32.totalorder %s12, 1
    %p30 = por %p28, %p29
    %p31 = scmp.ne.s32.totalorder %s20, %s21
    %p32 = scmp.eq.s32.totalorder %s12, 0
    %p33 = por %p31, %p32
    %p34 = scmp.ne.s32.totalorder %s20, %s21
    %p35 = scmp.eq.s32.totalorder %s13, 1
    %p36 = por %p34, %p35
    %p38 = scmp.ne.s32.totalorder %s21, %s37
    %p39 = scmp.eq.s32.totalorder %s13, 0
    %p40 = por %p38, %p39
    %s41 = ssub.s32 %s7, %s14
    %p42 = scmp.eq.s32.totalorder %s41, 0
    %s44 = sadd.s32 %s43, 1
    %s45 = scalar_select %p42, %s43, %s44
    %p48 = pneg %p42
    %p49 = scmp.eq.s32.totalorder %s7, 1
    %p50 = por %p48, %p49
    %p51 = scmp.ne.s32.totalorder %s43, %s46
    %p52 = scmp.eq.s32.totalorder %s7, 0
    %p53 = por %p51, %p52
    %p54 = scmp.ne.s32.totalorder %s43, %s46
    %p55 = scmp.eq.s32.totalorder %s12, 1
    %p56 = por %p54, %p55
    %p57 = scmp.ne.s32.totalorder %s46, %s47
    %p58 = scmp.eq.s32.totalorder %s12, 0
    %p59 = por %p57, %p58
    %p60 = scmp.ne.s32.totalorder %s46, %s47
    %p61 = scmp.eq.s32.totalorder %s13, 1
    %p62 = por %p60, %p61
    %p64 = scmp.ne.s32.totalorder %s47, %s63
    %p65 = scmp.eq.s32.totalorder %s13, 0
    %p66 = por %p64, %p65
    %p67 = scmp.le.s32.totalorder 1, %s7
    %p68 = scmp.lt.s32.totalorder %s7, 3
    %p69 = pnand %p67, %p68
    %p70 = pneg %p69
    // Predicated region
    $region9: #{pallas_relu.1} parent=5 // pred_check
      _
    $region10: #{pallas_relu.1} parent=5 // pred_check_branch
      %72 = sbr.rel (%p69) target = $region12
    $region11: #{pallas_relu.1} parent=5 // pred_region
      %s73 = ssub.s32 %s7, 1
    $region12: #{pallas_relu.1} parent=5 // pred_fallthru
      _
    %p74 = scmp.lt.s32.totalorder %s7, 2
    // Predicated region
    $region13: #{pallas_relu.1} parent=5 // pred_check
      %p75 = pneg %p74
    $region14: #{pallas_relu.1} parent=5 // pred_check_branch
      %77 = sbr.rel (%p75) target = $region16
    $region15: #{pallas_relu.1} parent=5 // pred_region
      // Predicated region
      $region17: #{pallas_relu.1} parent=15 // pred_check
        %p78 = pneg %p27
      $region18: #{pallas_relu.1} parent=15 // pred_check_branch
        %80 = sbr.rel (%p78) target = $region20
      $region19: #{pallas_relu.1} parent=15 // pred_region
        %s81 = smul.u32 40, %s7
        %p82 = scmp.lt.s32.totalorder %s81, 79
        %s83 = scalar_select %p82, %s81, 79
        %s84 = smul.addr %s83, 4
        %s85 = smul.addr %s84, 8
        %s86 = scalar_lea.vmem %s0, %s85
        %s87 = smul.u32 40, %s7
      $region20: #{pallas_relu.1} parent=15 // pred_fallthru
        _
    $region16: #{pallas_relu.1} parent=5 // pred_fallthru
      _
    %p88 = scmp.le.s32.totalorder 1, %s7
    %p89 = scmp.lt.s32.totalorder %s7, 3
    %p90 = pnand %p88, %p89
    %p91 = pneg %p90
    // Predicated region
    $region21: #{pallas_relu.1} parent=5 // pred_check
      _
    $region22: #{pallas_relu.1} parent=5 // pred_check_branch
      %93 = sbr.rel (%p90) target = $region24
    $region23: #{pallas_relu.1} parent=5 // pred_region
      %s94 = ssub.s32 %s7, 1
      %s95 = smul.u32 40, %s12
      %p96 = scmp.lt.s32.totalorder %s95, 79
      %s97 = scalar_select %p96, %s95, 79
      %s98 = smul.addr %s97, 4
      %s99 = smul.addr %s98, 8
      %s100 = scalar_lea.vmem %s0, %s99
      %p101 = pneg %p33
      %p102 = pneg %p30
      %p103 = pneg %p59
      %p104 = pneg %p56
      %s105 = smul.u32 40, %s12
      %p106 = scmp.lt.s32.totalorder %s105, 79
      %s107 = scalar_select %p106, %s105, 79
      %s108 = smul.addr %s107, 4
      %s109 = smul.addr %s108, 8
      %s110 = scalar_lea.vmem %s1, %s109
      %s111 = smul.u32 40, %s12
      %p112 = scmp.lt.s32.totalorder %s111, 79
      %s113 = scalar_select %p112, %s111, 79
      %s114 = smul.addr %s113, 4
      %s115 = smul.addr %s114, 8
      %s116 = scalar_lea.vmem %s0, %s115
      %s117 = smul.u32 40, %s12
      %s118 = smul.u32 40, %s12
      %p119 = scmp.lt.s32.totalorder %s118, 79
      %s120 = scalar_select %p119, %s118, 79
      %s121 = smul.addr %s120, 4
      %s122 = smul.addr %s121, 8
      %s123 = scalar_lea.vmem %s1, %s122
      %s124 = smul.u32 40, %s12
      %v125 = vld [vmem:[%s116] sm:$0xff]
      %v126 = vld [vmem:[%s116 + $0x8] sm:$0xff]
      %v127 = vld [vmem:[%s116 + $0x10] sm:$0xff]
      %v128 = vld [vmem:[%s116 + $0x18] sm:$0xff]
      %v129 = vld [vmem:[%s116 + $0x20] sm:$0xff]
      %v130 = vld [vmem:[%s116 + $0x28] sm:$0xff]
      %v131 = vld [vmem:[%s116 + $0x30] sm:$0xff]
      %v132 = vld [vmem:[%s116 + $0x38] sm:$0xff]
      %v133 = vld [vmem:[%s116 + $0x40] sm:$0xff]
      %v134 = vld [vmem:[%s116 + $0x48] sm:$0xff]
      %v135 = vld [vmem:[%s116 + $0x50] sm:$0xff]
      %v136 = vld [vmem:[%s116 + $0x58] sm:$0xff]
      %v137 = vld [vmem:[%s116 + $0x60] sm:$0xff]
      %v138 = vld [vmem:[%s116 + $0x68] sm:$0xff]
      %v139 = vld [vmem:[%s116 + $0x70] sm:$0xff]
      %v140 = vld [vmem:[%s116 + $0x78] sm:$0xff]
      %v141 = vld [vmem:[%s116 + $0x80] sm:$0xff]
      %v142 = vld [vmem:[%s116 + $0x88] sm:$0xff]
      %v143 = vld [vmem:[%s116 + $0x90] sm:$0xff]
      %v144 = vld [vmem:[%s116 + $0x98] sm:$0xff]
      %v145 = vld [vmem:[%s116 + $0xa0] sm:$0xff]
      %v146 = vld [vmem:[%s116 + $0xa8] sm:$0xff]
      %v147 = vld [vmem:[%s116 + $0xb0] sm:$0xff]
      %v148 = vld [vmem:[%s116 + $0xb8] sm:$0xff]
      %v149 = vld [vmem:[%s116 + $0xc0] sm:$0xff]
      %v150 = vld [vmem:[%s116 + $0xc8] sm:$0xff]
      %v151 = vld [vmem:[%s116 + $0xd0] sm:$0xff]
      %v152 = vld [vmem:[%s116 + $0xd8] sm:$0xff]
      %v153 = vld [vmem:[%s116 + $0xe0] sm:$0xff]
      %v154 = vld [vmem:[%s116 + $0xe8] sm:$0xff]
      %v155 = vld [vmem:[%s116 + $0xf0] sm:$0xff]
      %v156 = vld [vmem:[%s116 + $0xf8] sm:$0xff]
      %v157 = vld [vmem:[%s116 + $0x100] sm:$0xff]
      %v158 = vld [vmem:[%s116 + $0x108] sm:$0xff]
      %v159 = vld [vmem:[%s116 + $0x110] sm:$0xff]
      %v160 = vld [vmem:[%s116 + $0x118] sm:$0xff]
      %v161 = vld [vmem:[%s116 + $0x120] sm:$0xff]
      %v162 = vld [vmem:[%s116 + $0x128] sm:$0xff]
      %v163 = vld [vmem:[%s116 + $0x130] sm:$0xff]
      %v164 = vld [vmem:[%s116 + $0x138] sm:$0xff]
      %v165 = vld [vmem:[%s116 + $0x140] sm:$0xff]
      %v166 = vld [vmem:[%s116 + $0x148] sm:$0xff]
      %v167 = vld [vmem:[%s116 + $0x150] sm:$0xff]
      %v168 = vld [vmem:[%s116 + $0x158] sm:$0xff]
      %v169 = vld [vmem:[%s116 + $0x160] sm:$0xff]
      %v170 = vld [vmem:[%s116 + $0x168] sm:$0xff]
      %v171 = vld [vmem:[%s116 + $0x170] sm:$0xff]
      %v172 = vld [vmem:[%s116 + $0x178] sm:$0xff]
      %v173 = vld [vmem:[%s116 + $0x180] sm:$0xff]
      %v174 = vld [vmem:[%s116 + $0x188] sm:$0xff]
      %v175 = vld [vmem:[%s116 + $0x190] sm:$0xff]
      %v176 = vld [vmem:[%s116 + $0x198] sm:$0xff]
      %v177 = vld [vmem:[%s116 + $0x1a0] sm:$0xff]
      %v178 = vld [vmem:[%s116 + $0x1a8] sm:$0xff]
      %v179 = vld [vmem:[%s116 + $0x1b0] sm:$0xff]
      %v180 = vld [vmem:[%s116 + $0x1b8] sm:$0xff]
      %v181 = vld [vmem:[%s116 + $0x1c0] sm:$0xff]
      %v182 = vld [vmem:[%s116 + $0x1c8] sm:$0xff]
      %v183 = vld [vmem:[%s116 + $0x1d0] sm:$0xff]
      %v184 = vld [vmem:[%s116 + $0x1d8] sm:$0xff]
      %v185 = vld [vmem:[%s116 + $0x1e0] sm:$0xff]
      %v186 = vld [vmem:[%s116 + $0x1e8] sm:$0xff]
      %v187 = vld [vmem:[%s116 + $0x1f0] sm:$0xff]
      %v188 = vld [vmem:[%s116 + $0x1f8] sm:$0xff]
      %v189 = vld [vmem:[%s116 + $0x200] sm:$0xff]
      %v190 = vld [vmem:[%s116 + $0x208] sm:$0xff]
      %v191 = vld [vmem:[%s116 + $0x210] sm:$0xff]
      %v192 = vld [vmem:[%s116 + $0x218] sm:$0xff]
      %v193 = vld [vmem:[%s116 + $0x220] sm:$0xff]
      %v194 = vld [vmem:[%s116 + $0x228] sm:$0xff]
      %v195 = vld [vmem:[%s116 + $0x230] sm:$0xff]
      %v196 = vld [vmem:[%s116 + $0x238] sm:$0xff]
      %v197 = vld [vmem:[%s116 + $0x240] sm:$0xff]
      %v198 = vld [vmem:[%s116 + $0x248] sm:$0xff]
      %v199 = vld [vmem:[%s116 + $0x250] sm:$0xff]
      %v200 = vld [vmem:[%s116 + $0x258] sm:$0xff]
      %v201 = vld [vmem:[%s116 + $0x260] sm:$0xff]
      %v202 = vld [vmem:[%s116 + $0x268] sm:$0xff]
      %v203 = vld [vmem:[%s116 + $0x270] sm:$0xff]
      %v204 = vld [vmem:[%s116 + $0x278] sm:$0xff]
      %v205 = vld [vmem:[%s116 + $0x280] sm:$0xff]
      %v206 = vld [vmem:[%s116 + $0x288] sm:$0xff]
      %v207 = vld [vmem:[%s116 + $0x290] sm:$0xff]
      %v208 = vld [vmem:[%s116 + $0x298] sm:$0xff]
      %v209 = vld [vmem:[%s116 + $0x2a0] sm:$0xff]
      %v210 = vld [vmem:[%s116 + $0x2a8] sm:$0xff]
      %v211 = vld [vmem:[%s116 + $0x2b0] sm:$0xff]
      %v212 = vld [vmem:[%s116 + $0x2b8] sm:$0xff]
      %v213 = vld [vmem:[%s116 + $0x2c0] sm:$0xff]
      %v214 = vld [vmem:[%s116 + $0x2c8] sm:$0xff]
      %v215 = vld [vmem:[%s116 + $0x2d0] sm:$0xff]
      %v216 = vld [vmem:[%s116 + $0x2d8] sm:$0xff]
      %v217 = vld [vmem:[%s116 + $0x2e0] sm:$0xff]
      %v218 = vld [vmem:[%s116 + $0x2e8] sm:$0xff]
      %v219 = vld [vmem:[%s116 + $0x2f0] sm:$0xff]
      %v220 = vld [vmem:[%s116 + $0x2f8] sm:$0xff]
      %v221 = vld [vmem:[%s116 + $0x300] sm:$0xff]
      %v222 = vld [vmem:[%s116 + $0x308] sm:$0xff]
      %v223 = vld [vmem:[%s116 + $0x310] sm:$0xff]
      %v224 = vld [vmem:[%s116 + $0x318] sm:$0xff]
      %v225 = vld [vmem:[%s116 + $0x320] sm:$0xff]
      %v226 = vld [vmem:[%s116 + $0x328] sm:$0xff]
      %v227 = vld [vmem:[%s116 + $0x330] sm:$0xff]
      %v228 = vld [vmem:[%s116 + $0x338] sm:$0xff]
      %v229 = vld [vmem:[%s116 + $0x340] sm:$0xff]
      %v230 = vld [vmem:[%s116 + $0x348] sm:$0xff]
      %v231 = vld [vmem:[%s116 + $0x350] sm:$0xff]
      %v232 = vld [vmem:[%s116 + $0x358] sm:$0xff]
      %v233 = vld [vmem:[%s116 + $0x360] sm:$0xff]
      %v234 = vld [vmem:[%s116 + $0x368] sm:$0xff]
      %v235 = vld [vmem:[%s116 + $0x370] sm:$0xff]
      %v236 = vld [vmem:[%s116 + $0x378] sm:$0xff]
      %v237 = vld [vmem:[%s116 + $0x380] sm:$0xff]
      %v238 = vld [vmem:[%s116 + $0x388] sm:$0xff]
      %v239 = vld [vmem:[%s116 + $0x390] sm:$0xff]
      %v240 = vld [vmem:[%s116 + $0x398] sm:$0xff]
      %v241 = vld [vmem:[%s116 + $0x3a0] sm:$0xff]
      %v242 = vld [vmem:[%s116 + $0x3a8] sm:$0xff]
      %v243 = vld [vmem:[%s116 + $0x3b0] sm:$0xff]
      %v244 = vld [vmem:[%s116 + $0x3b8] sm:$0xff]
      %v245 = vld [vmem:[%s116 + $0x3c0] sm:$0xff]
      %v246 = vld [vmem:[%s116 + $0x3c8] sm:$0xff]
      %v247 = vld [vmem:[%s116 + $0x3d0] sm:$0xff]
      %v248 = vld [vmem:[%s116 + $0x3d8] sm:$0xff]
      %v249 = vld [vmem:[%s116 + $0x3e0] sm:$0xff]
      %v250 = vld [vmem:[%s116 + $0x3e8] sm:$0xff]
      %v251 = vld [vmem:[%s116 + $0x3f0] sm:$0xff]
      %v252 = vld [vmem:[%s116 + $0x3f8] sm:$0xff]
      %v253 = vld [vmem:[%s116 + $0x400] sm:$0xff]
      %v254 = vld [vmem:[%s116 + $0x408] sm:$0xff]
      %v255 = vld [vmem:[%s116 + $0x410] sm:$0xff]
      %v256 = vld [vmem:[%s116 + $0x418] sm:$0xff]
      %v257 = vld [vmem:[%s116 + $0x420] sm:$0xff]
      %v258 = vld [vmem:[%s116 + $0x428] sm:$0xff]
      %v259 = vld [vmem:[%s116 + $0x430] sm:$0xff]
      %v260 = vld [vmem:[%s116 + $0x438] sm:$0xff]
      %v261 = vld [vmem:[%s116 + $0x440] sm:$0xff]
      %v262 = vld [vmem:[%s116 + $0x448] sm:$0xff]
      %v263 = vld [vmem:[%s116 + $0x450] sm:$0xff]
      %v264 = vld [vmem:[%s116 + $0x458] sm:$0xff]
      %v265 = vld [vmem:[%s116 + $0x460] sm:$0xff]
      %v266 = vld [vmem:[%s116 + $0x468] sm:$0xff]
      %v267 = vld [vmem:[%s116 + $0x470] sm:$0xff]
      %v268 = vld [vmem:[%s116 + $0x478] sm:$0xff]
      %v269 = vld [vmem:[%s116 + $0x480] sm:$0xff]
      %v270 = vld [vmem:[%s116 + $0x488] sm:$0xff]
      %v271 = vld [vmem:[%s116 + $0x490] sm:$0xff]
      %v272 = vld [vmem:[%s116 + $0x498] sm:$0xff]
      %v273 = vld [vmem:[%s116 + $0x4a0] sm:$0xff]
      %v274 = vld [vmem:[%s116 + $0x4a8] sm:$0xff]
      %v275 = vld [vmem:[%s116 + $0x4b0] sm:$0xff]
      %v276 = vld [vmem:[%s116 + $0x4b8] sm:$0xff]
      %v277 = vld [vmem:[%s116 + $0x4c0] sm:$0xff]
      %v278 = vld [vmem:[%s116 + $0x4c8] sm:$0xff]
      %v279 = vld [vmem:[%s116 + $0x4d0] sm:$0xff]
      %v280 = vld [vmem:[%s116 + $0x4d8] sm:$0xff]
      %v281 = vld [vmem:[%s116 + $0x4e0] sm:$0xff]
      %v282 = vld [vmem:[%s116 + $0x4e8] sm:$0xff]
      %v283 = vld [vmem:[%s116 + $0x4f0] sm:$0xff]
      %v284 = vld [vmem:[%s116 + $0x4f8] sm:$0xff]
      %v285 = vmax.f32 %v125, 0.0
      %v286 = vmax.f32 %v126, 0.0
      %v287 = vmax.f32 %v127, 0.0
      %v288 = vmax.f32 %v128, 0.0
      %v289 = vmax.f32 %v129, 0.0
      %v290 = vmax.f32 %v130, 0.0
      %v291 = vmax.f32 %v131, 0.0
      %v292 = vmax.f32 %v132, 0.0
      %v293 = vmax.f32 %v133, 0.0
      %v294 = vmax.f32 %v134, 0.0
      %v295 = vmax.f32 %v135, 0.0
      %v296 = vmax.f32 %v136, 0.0
      %v297 = vmax.f32 %v137, 0.0
      %v298 = vmax.f32 %v138, 0.0
      %v299 = vmax.f32 %v139, 0.0
      %v300 = vmax.f32 %v140, 0.0
      %v301 = vmax.f32 %v141, 0.0
      %v302 = vmax.f32 %v142, 0.0
      %v303 = vmax.f32 %v143, 0.0
      %v304 = vmax.f32 %v144, 0.0
      %v305 = vmax.f32 %v145, 0.0
      %v306 = vmax.f32 %v146, 0.0
      %v307 = vmax.f32 %v147, 0.0
      %v308 = vmax.f32 %v148, 0.0
      %v309 = vmax.f32 %v149, 0.0
      %v310 = vmax.f32 %v150, 0.0
      %v311 = vmax.f32 %v151, 0.0
      %v312 = vmax.f32 %v152, 0.0
      %v313 = vmax.f32 %v153, 0.0
      %v314 = vmax.f32 %v154, 0.0
      %v315 = vmax.f32 %v155, 0.0
      %v316 = vmax.f32 %v156, 0.0
      %v317 = vmax.f32 %v157, 0.0
      %v318 = vmax.f32 %v158, 0.0
      %v319 = vmax.f32 %v159, 0.0
      %v320 = vmax.f32 %v160, 0.0
      %v321 = vmax.f32 %v161, 0.0
      %v322 = vmax.f32 %v162, 0.0
      %v323 = vmax.f32 %v163, 0.0
      %v324 = vmax.f32 %v164, 0.0
      %v325 = vmax.f32 %v165, 0.0
      %v326 = vmax.f32 %v166, 0.0
      %v327 = vmax.f32 %v167, 0.0
      %v328 = vmax.f32 %v168, 0.0
      %v329 = vmax.f32 %v169, 0.0
      %v330 = vmax.f32 %v170, 0.0
      %v331 = vmax.f32 %v171, 0.0
      %v332 = vmax.f32 %v172, 0.0
      %v333 = vmax.f32 %v173, 0.0
      %v334 = vmax.f32 %v174, 0.0
      %v335 = vmax.f32 %v175, 0.0
      %v336 = vmax.f32 %v176, 0.0
      %v337 = vmax.f32 %v177, 0.0
      %v338 = vmax.f32 %v178, 0.0
      %v339 = vmax.f32 %v179, 0.0
      %v340 = vmax.f32 %v180, 0.0
      %v341 = vmax.f32 %v181, 0.0
      %v342 = vmax.f32 %v182, 0.0
      %v343 = vmax.f32 %v183, 0.0
      %v344 = vmax.f32 %v184, 0.0
      %v345 = vmax.f32 %v185, 0.0
      %v346 = vmax.f32 %v186, 0.0
      %v347 = vmax.f32 %v187, 0.0
      %v348 = vmax.f32 %v188, 0.0
      %v349 = vmax.f32 %v189, 0.0
      %v350 = vmax.f32 %v190, 0.0
      %v351 = vmax.f32 %v191, 0.0
      %v352 = vmax.f32 %v192, 0.0
      %v353 = vmax.f32 %v193, 0.0
      %v354 = vmax.f32 %v194, 0.0
      %v355 = vmax.f32 %v195, 0.0
      %v356 = vmax.f32 %v196, 0.0
      %v357 = vmax.f32 %v197, 0.0
      %v358 = vmax.f32 %v198, 0.0
      %v359 = vmax.f32 %v199, 0.0
      %v360 = vmax.f32 %v200, 0.0
      %v361 = vmax.f32 %v201, 0.0
      %v362 = vmax.f32 %v202, 0.0
      %v363 = vmax.f32 %v203, 0.0
      %v364 = vmax.f32 %v204, 0.0
      %v365 = vmax.f32 %v205, 0.0
      %v366 = vmax.f32 %v206, 0.0
      %v367 = vmax.f32 %v207, 0.0
      %v368 = vmax.f32 %v208, 0.0
      %v369 = vmax.f32 %v209, 0.0
      %v370 = vmax.f32 %v210, 0.0
      %v371 = vmax.f32 %v211, 0.0
      %v372 = vmax.f32 %v212, 0.0
      %v373 = vmax.f32 %v213, 0.0
      %v374 = vmax.f32 %v214, 0.0
      %v375 = vmax.f32 %v215, 0.0
      %v376 = vmax.f32 %v216, 0.0
      %v377 = vmax.f32 %v217, 0.0
      %v378 = vmax.f32 %v218, 0.0
      %v379 = vmax.f32 %v219, 0.0
      %v380 = vmax.f32 %v220, 0.0
      %v381 = vmax.f32 %v221, 0.0
      %v382 = vmax.f32 %v222, 0.0
      %v383 = vmax.f32 %v223, 0.0
      %v384 = vmax.f32 %v224, 0.0
      %v385 = vmax.f32 %v225, 0.0
      %v386 = vmax.f32 %v226, 0.0
      %v387 = vmax.f32 %v227, 0.0
      %v388 = vmax.f32 %v228, 0.0
      %v389 = vmax.f32 %v229, 0.0
      %v390 = vmax.f32 %v230, 0.0
      %v391 = vmax.f32 %v231, 0.0
      %v392 = vmax.f32 %v232, 0.0
      %v393 = vmax.f32 %v233, 0.0
      %v394 = vmax.f32 %v234, 0.0
      %v395 = vmax.f32 %v235, 0.0
      %v396 = vmax.f32 %v236, 0.0
      %v397 = vmax.f32 %v237, 0.0
      %v398 = vmax.f32 %v238, 0.0
      %v399 = vmax.f32 %v239, 0.0
      %v400 = vmax.f32 %v240, 0.0
      %v401 = vmax.f32 %v241, 0.0
      %v402 = vmax.f32 %v242, 0.0
      %v403 = vmax.f32 %v243, 0.0
      %v404 = vmax.f32 %v244, 0.0
      %v405 = vmax.f32 %v245, 0.0
      %v406 = vmax.f32 %v246, 0.0
      %v407 = vmax.f32 %v247, 0.0
      %v408 = vmax.f32 %v248, 0.0
      %v409 = vmax.f32 %v249, 0.0
      %v410 = vmax.f32 %v250, 0.0
      %v411 = vmax.f32 %v251, 0.0
      %v412 = vmax.f32 %v252, 0.0
      %v413 = vmax.f32 %v253, 0.0
      %v414 = vmax.f32 %v254, 0.0
      %v415 = vmax.f32 %v255, 0.0
      %v416 = vmax.f32 %v256, 0.0
      %v417 = vmax.f32 %v257, 0.0
      %v418 = vmax.f32 %v258, 0.0
      %v419 = vmax.f32 %v259, 0.0
      %v420 = vmax.f32 %v260, 0.0
      %v421 = vmax.f32 %v261, 0.0
      %v422 = vmax.f32 %v262, 0.0
      %v423 = vmax.f32 %v263, 0.0
      %v424 = vmax.f32 %v264, 0.0
      %v425 = vmax.f32 %v265, 0.0
      %v426 = vmax.f32 %v266, 0.0
      %v427 = vmax.f32 %v267, 0.0
      %v428 = vmax.f32 %v268, 0.0
      %v429 = vmax.f32 %v269, 0.0
      %v430 = vmax.f32 %v270, 0.0
      %v431 = vmax.f32 %v271, 0.0
      %v432 = vmax.f32 %v272, 0.0
      %v433 = vmax.f32 %v273, 0.0
      %v434 = vmax.f32 %v274, 0.0
      %v435 = vmax.f32 %v275, 0.0
      %v436 = vmax.f32 %v276, 0.0
      %v437 = vmax.f32 %v277, 0.0
      %v438 = vmax.f32 %v278, 0.0
      %v439 = vmax.f32 %v279, 0.0
      %v440 = vmax.f32 %v280, 0.0
      %v441 = vmax.f32 %v281, 0.0
      %v442 = vmax.f32 %v282, 0.0
      %v443 = vmax.f32 %v283, 0.0
      %v444 = vmax.f32 %v284, 0.0
      %445 = vst [vmem:[%s123] sm:$0xff] %v285
      %446 = vst [vmem:[%s123 + $0x8] sm:$0xff] %v286
      %447 = vst [vmem:[%s123 + $0x10] sm:$0xff] %v287
      %448 = vst [vmem:[%s123 + $0x18] sm:$0xff] %v288
      %449 = vst [vmem:[%s123 + $0x20] sm:$0xff] %v289
      %450 = vst [vmem:[%s123 + $0x28] sm:$0xff] %v290
      %451 = vst [vmem:[%s123 + $0x30] sm:$0xff] %v291
      %452 = vst [vmem:[%s123 + $0x38] sm:$0xff] %v292
      %453 = vst [vmem:[%s123 + $0x40] sm:$0xff] %v293
      %454 = vst [vmem:[%s123 + $0x48] sm:$0xff] %v294
      %455 = vst [vmem:[%s123 + $0x50] sm:$0xff] %v295
      %456 = vst [vmem:[%s123 + $0x58] sm:$0xff] %v296
      %457 = vst [vmem:[%s123 + $0x60] sm:$0xff] %v297
      %458 = vst [vmem:[%s123 + $0x68] sm:$0xff] %v298
      %459 = vst [vmem:[%s123 + $0x70] sm:$0xff] %v299
      %460 = vst [vmem:[%s123 + $0x78] sm:$0xff] %v300
      %461 = vst [vmem:[%s123 + $0x80] sm:$0xff] %v301
      %462 = vst [vmem:[%s123 + $0x88] sm:$0xff] %v302
      %463 = vst [vmem:[%s123 + $0x90] sm:$0xff] %v303
      %464 = vst [vmem:[%s123 + $0x98] sm:$0xff] %v304
      %465 = vst [vmem:[%s123 + $0xa0] sm:$0xff] %v305
      %466 = vst [vmem:[%s123 + $0xa8] sm:$0xff] %v306
      %467 = vst [vmem:[%s123 + $0xb0] sm:$0xff] %v307
      %468 = vst [vmem:[%s123 + $0xb8] sm:$0xff] %v308
      %469 = vst [vmem:[%s123 + $0xc0] sm:$0xff] %v309
      %470 = vst [vmem:[%s123 + $0xc8] sm:$0xff] %v310
      %471 = vst [vmem:[%s123 + $0xd0] sm:$0xff] %v311
      %472 = vst [vmem:[%s123 + $0xd8] sm:$0xff] %v312
      %473 = vst [vmem:[%s123 + $0xe0] sm:$0xff] %v313
      %474 = vst [vmem:[%s123 + $0xe8] sm:$0xff] %v314
      %475 = vst [vmem:[%s123 + $0xf0] sm:$0xff] %v315
      %476 = vst [vmem:[%s123 + $0xf8] sm:$0xff] %v316
      %477 = vst [vmem:[%s123 + $0x100] sm:$0xff] %v317
      %478 = vst [vmem:[%s123 + $0x108] sm:$0xff] %v318
      %479 = vst [vmem:[%s123 + $0x110] sm:$0xff] %v319
      %480 = vst [vmem:[%s123 + $0x118] sm:$0xff] %v320
      %481 = vst [vmem:[%s123 + $0x120] sm:$0xff] %v321
      %482 = vst [vmem:[%s123 + $0x128] sm:$0xff] %v322
      %483 = vst [vmem:[%s123 + $0x130] sm:$0xff] %v323
      %484 = vst [vmem:[%s123 + $0x138] sm:$0xff] %v324
      %485 = vst [vmem:[%s123 + $0x140] sm:$0xff] %v325
      %486 = vst [vmem:[%s123 + $0x148] sm:$0xff] %v326
      %487 = vst [vmem:[%s123 + $0x150] sm:$0xff] %v327
      %488 = vst [vmem:[%s123 + $0x158] sm:$0xff] %v328
      %489 = vst [vmem:[%s123 + $0x160] sm:$0xff] %v329
      %490 = vst [vmem:[%s123 + $0x168] sm:$0xff] %v330
      %491 = vst [vmem:[%s123 + $0x170] sm:$0xff] %v331
      %492 = vst [vmem:[%s123 + $0x178] sm:$0xff] %v332
      %493 = vst [vmem:[%s123 + $0x180] sm:$0xff] %v333
      %494 = vst [vmem:[%s123 + $0x188] sm:$0xff] %v334
      %495 = vst [vmem:[%s123 + $0x190] sm:$0xff] %v335
      %496 = vst [vmem:[%s123 + $0x198] sm:$0xff] %v336
      %497 = vst [vmem:[%s123 + $0x1a0] sm:$0xff] %v337
      %498 = vst [vmem:[%s123 + $0x1a8] sm:$0xff] %v338
      %499 = vst [vmem:[%s123 + $0x1b0] sm:$0xff] %v339
      %500 = vst [vmem:[%s123 + $0x1b8] sm:$0xff] %v340
      %501 = vst [vmem:[%s123 + $0x1c0] sm:$0xff] %v341
      %502 = vst [vmem:[%s123 + $0x1c8] sm:$0xff] %v342
      %503 = vst [vmem:[%s123 + $0x1d0] sm:$0xff] %v343
      %504 = vst [vmem:[%s123 + $0x1d8] sm:$0xff] %v344
      %505 = vst [vmem:[%s123 + $0x1e0] sm:$0xff] %v345
      %506 = vst [vmem:[%s123 + $0x1e8] sm:$0xff] %v346
      %507 = vst [vmem:[%s123 + $0x1f0] sm:$0xff] %v347
      %508 = vst [vmem:[%s123 + $0x1f8] sm:$0xff] %v348
      %509 = vst [vmem:[%s123 + $0x200] sm:$0xff] %v349
      %510 = vst [vmem:[%s123 + $0x208] sm:$0xff] %v350
      %511 = vst [vmem:[%s123 + $0x210] sm:$0xff] %v351
      %512 = vst [vmem:[%s123 + $0x218] sm:$0xff] %v352
      %513 = vst [vmem:[%s123 + $0x220] sm:$0xff] %v353
      %514 = vst [vmem:[%s123 + $0x228] sm:$0xff] %v354
      %515 = vst [vmem:[%s123 + $0x230] sm:$0xff] %v355
      %516 = vst [vmem:[%s123 + $0x238] sm:$0xff] %v356
      %517 = vst [vmem:[%s123 + $0x240] sm:$0xff] %v357
      %518 = vst [vmem:[%s123 + $0x248] sm:$0xff] %v358
      %519 = vst [vmem:[%s123 + $0x250] sm:$0xff] %v359
      %520 = vst [vmem:[%s123 + $0x258] sm:$0xff] %v360
      %521 = vst [vmem:[%s123 + $0x260] sm:$0xff] %v361
      %522 = vst [vmem:[%s123 + $0x268] sm:$0xff] %v362
      %523 = vst [vmem:[%s123 + $0x270] sm:$0xff] %v363
      %524 = vst [vmem:[%s123 + $0x278] sm:$0xff] %v364
      %525 = vst [vmem:[%s123 + $0x280] sm:$0xff] %v365
      %526 = vst [vmem:[%s123 + $0x288] sm:$0xff] %v366
      %527 = vst [vmem:[%s123 + $0x290] sm:$0xff] %v367
      %528 = vst [vmem:[%s123 + $0x298] sm:$0xff] %v368
      %529 = vst [vmem:[%s123 + $0x2a0] sm:$0xff] %v369
      %530 = vst [vmem:[%s123 + $0x2a8] sm:$0xff] %v370
      %531 = vst [vmem:[%s123 + $0x2b0] sm:$0xff] %v371
      %532 = vst [vmem:[%s123 + $0x2b8] sm:$0xff] %v372
      %533 = vst [vmem:[%s123 + $0x2c0] sm:$0xff] %v373
      %534 = vst [vmem:[%s123 + $0x2c8] sm:$0xff] %v374
      %535 = vst [vmem:[%s123 + $0x2d0] sm:$0xff] %v375
      %536 = vst [vmem:[%s123 + $0x2d8] sm:$0xff] %v376
      %537 = vst [vmem:[%s123 + $0x2e0] sm:$0xff] %v377
      %538 = vst [vmem:[%s123 + $0x2e8] sm:$0xff] %v378
      %539 = vst [vmem:[%s123 + $0x2f0] sm:$0xff] %v379
      %540 = vst [vmem:[%s123 + $0x2f8] sm:$0xff] %v380
      %541 = vst [vmem:[%s123 + $0x300] sm:$0xff] %v381
      %542 = vst [vmem:[%s123 + $0x308] sm:$0xff] %v382
      %543 = vst [vmem:[%s123 + $0x310] sm:$0xff] %v383
      %544 = vst [vmem:[%s123 + $0x318] sm:$0xff] %v384
      %545 = vst [vmem:[%s123 + $0x320] sm:$0xff] %v385
      %546 = vst [vmem:[%s123 + $0x328] sm:$0xff] %v386
      %547 = vst [vmem:[%s123 + $0x330] sm:$0xff] %v387
      %548 = vst [vmem:[%s123 + $0x338] sm:$0xff] %v388
      %549 = vst [vmem:[%s123 + $0x340] sm:$0xff] %v389
      %550 = vst [vmem:[%s123 + $0x348] sm:$0xff] %v390
      %551 = vst [vmem:[%s123 + $0x350] sm:$0xff] %v391
      %552 = vst [vmem:[%s123 + $0x358] sm:$0xff] %v392
      %553 = vst [vmem:[%s123 + $0x360] sm:$0xff] %v393
      %554 = vst [vmem:[%s123 + $0x368] sm:$0xff] %v394
      %555 = vst [vmem:[%s123 + $0x370] sm:$0xff] %v395
      %556 = vst [vmem:[%s123 + $0x378] sm:$0xff] %v396
      %557 = vst [vmem:[%s123 + $0x380] sm:$0xff] %v397
      %558 = vst [vmem:[%s123 + $0x388] sm:$0xff] %v398
      %559 = vst [vmem:[%s123 + $0x390] sm:$0xff] %v399
      %560 = vst [vmem:[%s123 + $0x398] sm:$0xff] %v400
      %561 = vst [vmem:[%s123 + $0x3a0] sm:$0xff] %v401
      %562 = vst [vmem:[%s123 + $0x3a8] sm:$0xff] %v402
      %563 = vst [vmem:[%s123 + $0x3b0] sm:$0xff] %v403
      %564 = vst [vmem:[%s123 + $0x3b8] sm:$0xff] %v404
      %565 = vst [vmem:[%s123 + $0x3c0] sm:$0xff] %v405
      %566 = vst [vmem:[%s123 + $0x3c8] sm:$0xff] %v406
      %567 = vst [vmem:[%s123 + $0x3d0] sm:$0xff] %v407
      %568 = vst [vmem:[%s123 + $0x3d8] sm:$0xff] %v408
      %569 = vst [vmem:[%s123 + $0x3e0] sm:$0xff] %v409
      %570 = vst [vmem:[%s123 + $0x3e8] sm:$0xff] %v410
      %571 = vst [vmem:[%s123 + $0x3f0] sm:$0xff] %v411
      %572 = vst [vmem:[%s123 + $0x3f8] sm:$0xff] %v412
      %573 = vst [vmem:[%s123 + $0x400] sm:$0xff] %v413
      %574 = vst [vmem:[%s123 + $0x408] sm:$0xff] %v414
      %575 = vst [vmem:[%s123 + $0x410] sm:$0xff] %v415
      %576 = vst [vmem:[%s123 + $0x418] sm:$0xff] %v416
      %577 = vst [vmem:[%s123 + $0x420] sm:$0xff] %v417
      %578 = vst [vmem:[%s123 + $0x428] sm:$0xff] %v418
      %579 = vst [vmem:[%s123 + $0x430] sm:$0xff] %v419
      %580 = vst [vmem:[%s123 + $0x438] sm:$0xff] %v420
      %581 = vst [vmem:[%s123 + $0x440] sm:$0xff] %v421
      %582 = vst [vmem:[%s123 + $0x448] sm:$0xff] %v422
      %583 = vst [vmem:[%s123 + $0x450] sm:$0xff] %v423
      %584 = vst [vmem:[%s123 + $0x458] sm:$0xff] %v424
      %585 = vst [vmem:[%s123 + $0x460] sm:$0xff] %v425
      %586 = vst [vmem:[%s123 + $0x468] sm:$0xff] %v426
      %587 = vst [vmem:[%s123 + $0x470] sm:$0xff] %v427
      %588 = vst [vmem:[%s123 + $0x478] sm:$0xff] %v428
      %589 = vst [vmem:[%s123 + $0x480] sm:$0xff] %v429
      %590 = vst [vmem:[%s123 + $0x488] sm:$0xff] %v430
      %591 = vst [vmem:[%s123 + $0x490] sm:$0xff] %v431
      %592 = vst [vmem:[%s123 + $0x498] sm:$0xff] %v432
      %593 = vst [vmem:[%s123 + $0x4a0] sm:$0xff] %v433
      %594 = vst [vmem:[%s123 + $0x4a8] sm:$0xff] %v434
      %595 = vst [vmem:[%s123 + $0x4b0] sm:$0xff] %v435
      %596 = vst [vmem:[%s123 + $0x4b8] sm:$0xff] %v436
      %597 = vst [vmem:[%s123 + $0x4c0] sm:$0xff] %v437
      %598 = vst [vmem:[%s123 + $0x4c8] sm:$0xff] %v438
      %599 = vst [vmem:[%s123 + $0x4d0] sm:$0xff] %v439
      %600 = vst [vmem:[%s123 + $0x4d8] sm:$0xff] %v440
      %601 = vst [vmem:[%s123 + $0x4e0] sm:$0xff] %v441
      %602 = vst [vmem:[%s123 + $0x4e8] sm:$0xff] %v442
      %603 = vst [vmem:[%s123 + $0x4f0] sm:$0xff] %v443
      %604 = vst [vmem:[%s123 + $0x4f8] sm:$0xff] %v444
      %s605 = smul.u32 40, %s12
      %p606 = scmp.lt.s32.totalorder %s605, 79
      %s607 = scalar_select %p606, %s605, 79
      %s608 = smul.addr %s607, 4
      %s609 = smul.addr %s608, 8
      %s610 = scalar_lea.vmem %s1, %s609
      // Predicated region
      $region25: #{pallas_relu.1} parent=23 // pred_check
        %p611 = pneg %p56
      $region26: #{pallas_relu.1} parent=23 // pred_check_branch
        %613 = sbr.rel (%p611) target = $region28
      $region27: #{pallas_relu.1} parent=23 // pred_region
        %s614 = smul.u32 40, %s12
      $region28: #{pallas_relu.1} parent=23 // pred_fallthru
        _
    $region24: #{pallas_relu.1} parent=5 // pred_fallthru
      _
    %p615 = scmp.le.s32.totalorder 2, %s7
    // Predicated region
    $region29: #{pallas_relu.1} parent=5 // pred_check
      %p616 = pneg %p615
    $region30: #{pallas_relu.1} parent=5 // pred_check_branch
      %618 = sbr.rel (%p616) target = $region32
    $region31: #{pallas_relu.1} parent=5 // pred_region
      %s619 = ssub.s32 %s7, 2
      // Predicated region
      $region33: #{pallas_relu.1} parent=31 // pred_check
        %p620 = pneg %p62
      $region34: #{pallas_relu.1} parent=31 // pred_check_branch
        %622 = sbr.rel (%p620) target = $region36
      $region35: #{pallas_relu.1} parent=31 // pred_region
        %s623 = smul.u32 40, %s13
        %p624 = scmp.lt.s32.totalorder %s623, 79
        %s625 = scalar_select %p624, %s623, 79
        %s626 = smul.addr %s625, 4
        %s627 = smul.addr %s626, 8
        %s628 = scalar_lea.vmem %s1, %s627
      $region36: #{pallas_relu.1} parent=31 // pred_fallthru
        _
    $region32: #{pallas_relu.1} parent=5 // pred_fallthru
      _
  $region6: #{pallas_relu.1} parent=0 // loop_footer
    %s11 = sadd.s32 1, %s7
  $region7: #{pallas_relu.1} parent=0 // loop_footer_branch
    %6 = sbr.rel target = $region3
  $region8: #{pallas_relu.1} parent=0 // loop_exit
    _

</llo_original>
